<compile_context>
chip_gen: v5e
topology: v5e:2x2
jax: 0.10.0
libtpu: 0.0.40
codegen_flags: <defaults>
</compile_context>

<pallas_src>
import functools

import jax
import jax.numpy as jnp
from jax import lax
from jax.experimental import pallas as pl
from jax.experimental.pallas import tpu as pltpu

NEG_SLOPE = 0.01   # nn.LeakyReLU default
BN_EPS = 1e-5      # nn.BatchNorm1d default


def _conv_abs_pool(x_ref, w_ref, b_ref, l_p):
    """Conv1d(1->F,K) -> abs -> MaxPool1d(3), signal length on the lane axis.

    x_ref: (TN, 3, L3)  stride-3 split input, x_ref[n, r, q] = x[n, 3q + r]
    w_ref: (F, K)       conv weight
    b_ref: (F, 1)       conv bias
    Returns pooled (TN, F, l_p) float32.
    """
    TN = x_ref.shape[0]
    F, K = w_ref.shape

    # Bias folded into the accumulator init (hoisted broadcast, reused per j).
    bias = jnp.broadcast_to(b_ref[...][None, :, :], (TN, F, l_p))

    pooled = None
    for j in range(3):                                # offset inside the pool window
        acc = bias
        for k in range(K):                            # small static tap loop (VPU MAC)
            r, off = (j + k) % 3, (j + k) // 3
            xs = x_ref[:, r:r + 1, off:off + l_p]     # (TN, 1, l_p) contiguous lanes
            wk = w_ref[:, k:k + 1][None, :, :]        # (1, F, 1)
            acc = acc + xs * wk
        a = jnp.abs(acc)                              # |conv| at pool offset j
        pooled = a if j == 0 else jnp.maximum(pooled, a)
    return pooled


def _stats_kernel(x_ref, w_ref, b_ref, stats_ref, *, l_p):
    """Pass 1: per-tile partial BN statistics only (no pooled writeback)."""
    F = w_ref.shape[0]
    pooled = _conv_abs_pool(x_ref, w_ref, b_ref, l_p)          # (TN, F, l_p) f32
    s = jnp.sum(pooled, axis=2)                                # (TN, F) lane reduce
    ss = jnp.sum(pooled * pooled, axis=2)                      # (TN, F)
    tot = jnp.sum(s, axis=0, keepdims=True)                    # (1, F)
    tot_sq = jnp.sum(ss, axis=0, keepdims=True)                # (1, F)
    # Lane-dense stats: F lives on the 128-lane axis.
    stats_ref[:, 0:1, :] = tot.reshape(1, 1, F)
    stats_ref[:, 1:2, :] = tot_sq.reshape(1, 1, F)


def _fwd_kernel(x_ref, w_ref, b_ref, scale_ref, shift_ref, o_ref, *, l_p):
    """Pass 2: recompute conv+|.|+pool, fuse BN affine + LeakyReLU into output."""
    pooled = _conv_abs_pool(x_ref, w_ref, b_ref, l_p)          # (TN, F, l_p) f32
    y = pooled * scale_ref[...][None, :, :] + shift_ref[...][None, :, :]
    o_ref[...] = jnp.where(y > 0, y, NEG_SLOPE * y).astype(o_ref.dtype)


def sinc_filters(x, weight, bias, gamma, beta, *, batch_tile=None,
                 vmem_budget_bytes=16 * 2**20):
    """x: (N, 1, L) f32; weight: (F, 1, K); bias/gamma/beta: (F,).

    Returns (N, F, (L-K+1)//3) float32, matching the PyTorch module's forward
    (training-mode BatchNorm statistics).
    """
    N, cin, L = x.shape
    assert cin == 1
    F, _, K = weight.shape
    L_c = L - K + 1            # Conv1d 'valid' output length
    L_p = L_c // 3             # MaxPool1d(3) output length
    assert L_p >= 1

    # Stride-3 split length: kernel slices [off : off + L_p] with off <= (K+1)//3
    # must stay in-bounds, and 3*L3 must cover the original signal.
    L3 = max(L_p + (K + 1) // 3, -(-L // 3))

    # --- batch tiling: biggest divisor of N whose double-buffered working set
    #     fits the VMEM budget; prefer >=2 grid steps (v7x megacore needs work
    #     on the "parallel" axis). -------------------------------------------
    bytes_per_n = 4 * (2 * 3 * L3 + 4 * F * L_p)   # dbl-buf in/out + ~2 f32 temps
    if batch_tile is None:
        cap = max(1, vmem_budget_bytes // max(bytes_per_n, 1))
        divisors = [d for d in range(1, N + 1) if N % d == 0]
        fitting = [d for d in divisors if d <= cap] or [1]
        batch_tile = max(fitting)
        two_plus = [d for d in fitting if N // d >= 2]
        if two_plus:
            batch_tile = max(two_plus)
    TN = batch_tile
    assert N % TN == 0, "batch tile must divide batch size"
    n_tiles = N // TN

    # Scoped VMEM limit sized to the tile (clamped so it is safe on v7x 64 MiB).
    vmem_limit = int(min(max(2 * TN * bytes_per_n, 16 * 2**20), 48 * 2**20))
    params = pltpu.CompilerParams(
        dimension_semantics=("parallel",),
        vmem_limit_bytes=vmem_limit,
    )

    # --- layout plumbing (cheap, on the small input): stride-3 split ---------
    x2 = x[:, 0, :].astype(jnp.float32)                        # (N, L)
    x2 = jnp.pad(x2, ((0, 0), (0, 3 * L3 - L)))                # (N, 3*L3)
    x3 = x2.reshape(N, L3, 3).transpose(0, 2, 1)               # (N, 3, L3)

    w2 = weight[:, 0, :].astype(jnp.float32)                   # (F, K)
    b2 = bias.reshape(F, 1).astype(jnp.float32)                # (F, 1)

    # --- pass 1: partial BN stats only (no pooled HBM writeback) -------------
    stats = pl.pallas_call(
        functools.partial(_stats_kernel, l_p=L_p),
        grid=(n_tiles,),
        in_specs=[
            pl.BlockSpec((TN, 3, L3), lambda i: (i, 0, 0)),
            pl.BlockSpec((F, K), lambda i: (0, 0)),
            pl.BlockSpec((F, 1), lambda i: (0, 0)),
        ],
        out_specs=pl.BlockSpec((1, 2, F), lambda i: (i, 0, 0)),
        out_shape=jax.ShapeDtypeStruct((n_tiles, 2, F), jnp.float32),
        compiler_params=params,
    )(x3, w2, b2)

    # --- combine partial stats -> training-mode BN scale/shift (tiny, (F,)) ---
    cnt = jnp.float32(N * L_p)
    tot = jnp.sum(stats[:, 0, :], axis=0)                      # (F,)
    tot_sq = jnp.sum(stats[:, 1, :], axis=0)                   # (F,)
    mean = tot / cnt
    var = jnp.maximum(tot_sq / cnt - mean * mean, 0.0)         # biased variance
    scale = gamma.astype(jnp.float32) * lax.rsqrt(var + BN_EPS)
    shift = beta.astype(jnp.float32) - mean * scale

    # --- pass 2: recompute conv+|.|+pool, fused normalize + LeakyReLU --------
    out = pl.pallas_call(
        functools.partial(_fwd_kernel, l_p=L_p),
        grid=(n_tiles,),
        in_specs=[
            pl.BlockSpec((TN, 3, L3), lambda i: (i, 0, 0)),
            pl.BlockSpec((F, K), lambda i: (0, 0)),
            pl.BlockSpec((F, 1), lambda i: (0, 0)),
            pl.BlockSpec((F, 1), lambda i: (0, 0)),
            pl.BlockSpec((F, 1), lambda i: (0, 0)),
        ],
        out_specs=pl.BlockSpec((TN, F, L_p), lambda i: (i, 0, 0)),
        out_shape=jax.ShapeDtypeStruct((N, F, L_p), jnp.float32),
        compiler_params=params,
    )(x3, w2, b2, scale.reshape(F, 1), shift.reshape(F, 1))

    return out                                                 # (N, F, L_p)


def _reference(x, weight, bias, gamma, beta):
    """Pure-JAX reference mirroring the PyTorch forward (training-mode BN)."""
    N, _, L = x.shape
    F, _, K = weight.shape
    L_c = L - K + 1
    L_p = L_c // 3
    cols = jnp.stack([x[:, 0, k:k + L_c] for k in range(K)], axis=1)   # (N,K,Lc)
    conv = jnp.einsum("fk,nkl->nfl", weight[:, 0, :], cols) + bias[None, :, None]
    conv = jnp.abs(conv)
    pooled = conv[:, :, : 3 * L_p].reshape(N, F, L_p, 3).max(axis=-1)
    mean = pooled.mean(axis=(0, 2), keepdims=True)
    var = ((pooled - mean) ** 2).mean(axis=(0, 2), keepdims=True)
    y = (pooled - mean) / jnp.sqrt(var + BN_EPS)
    y = y * gamma[None, :, None] + beta[None, :, None]
    return jnp.where(y > 0, y, NEG_SLOPE * y)


if __name__ == "__main__":
    filters, kernel_size = 4, 5
    N, L = 2, 100

    key = jax.random.PRNGKey(0)
    kx, kw, kb = jax.random.split(key, 3)

    x = jax.random.normal(kx, (N, 1, L), dtype=jnp.float32)

    # deterministic synthetic params (shapes match nn.Conv1d / nn.BatchNorm1d)
    bound = 1.0 / (1 * kernel_size) ** 0.5
    weight = jax.random.uniform(kw, (filters, 1, kernel_size),
                                minval=-bound, maxval=bound, dtype=jnp.float32)
    bias = jax.random.uniform(kb, (filters,), minval=-bound, maxval=bound,
                              dtype=jnp.float32)
    gamma = jnp.ones((filters,), jnp.float32)   # BatchNorm1d default init
    beta = jnp.zeros((filters,), jnp.float32)

    out = jax.block_until_ready(sinc_filters(x, weight, bias, gamma, beta))

    ref = _reference(x, weight, bias, gamma, beta)
    assert out.shape == (N, filters, (L - kernel_size + 1) // 3)
    assert jnp.allclose(out, ref, rtol=1e-4, atol=1e-4), "mismatch vs reference"

    print("KERNEL_OK")
</pallas_src>

<mosaic_0001>
module attributes {stable_mosaic.version = 11 : i64} {
  func.func @_stats_kernel(%arg0: i32, %arg1: memref<1x3x34xf32, #tpu.memory_space<vmem>>, %arg2: memref<4x5xf32, #tpu.memory_space<vmem>>, %arg3: memref<4x1xf32, #tpu.memory_space<vmem>>, %arg4: memref<1x2x4xf32, #tpu.memory_space<vmem>>) attributes {dimension_semantics = [#tpu.dimension_semantics<parallel>], iteration_bounds = array<i64: 2>, scalar_prefetch = 0 : i64, scratch_operands = 0 : i64, tpu.core_type = #tpu.core_type<tc>, window_params = [{transform_indices = @transform_0, window_bounds = array<i64: 1, 3, 34>}, {pipeline_mode = #tpu.pipeline_mode<synchronous>, transform_indices = @transform_1, window_bounds = array<i64: 4, 5>}, {pipeline_mode = #tpu.pipeline_mode<synchronous>, transform_indices = @transform_2, window_bounds = array<i64: 4, 1>}, {transform_indices = @transform_3, window_bounds = array<i64: 1, 2, 4>}]} {
    %c0 = arith.constant 0 : index
    %c0_0 = arith.constant 0 : index
    %0 = vector.load %arg3[%c0, %c0_0] : memref<4x1xf32, #tpu.memory_space<vmem>>, vector<4x1xf32>
    %1 = vector.shape_cast %0 : vector<4x1xf32> to vector<1x4x1xf32>
    %2 = vector.shape_cast %1 : vector<1x4x1xf32> to vector<1x4x1xf32>
    %3 = vector.broadcast %2 : vector<1x4x1xf32> to vector<1x4x32xf32>
    %c0_1 = arith.constant 0 : index
    %c0_2 = arith.constant 0 : index
    %c0_3 = arith.constant 0 : index
    %4 = vector.load %arg1[%c0_1, %c0_2, %c0_3] : memref<1x3x34xf32, #tpu.memory_space<vmem>>, vector<1x1x32xf32>
    %c0_4 = arith.constant 0 : index
    %c0_5 = arith.constant 0 : index
    %5 = vector.load %arg2[%c0_4, %c0_5] : memref<4x5xf32, #tpu.memory_space<vmem>>, vector<4x1xf32>
    %6 = vector.shape_cast %5 : vector<4x1xf32> to vector<1x4x1xf32>
    %7 = vector.broadcast %4 : vector<1x1x32xf32> to vector<1x4x32xf32>
    %8 = vector.broadcast %6 : vector<1x4x1xf32> to vector<1x4x32xf32>
    %9 = arith.mulf %7, %8 : vector<1x4x32xf32>
    %10 = arith.addf %3, %9 : vector<1x4x32xf32>
    %c0_6 = arith.constant 0 : index
    %c1 = arith.constant 1 : index
    %c0_7 = arith.constant 0 : index
    %11 = vector.load %arg1[%c0_6, %c1, %c0_7] : memref<1x3x34xf32, #tpu.memory_space<vmem>>, vector<1x1x32xf32>
    %c0_8 = arith.constant 0 : index
    %c1_9 = arith.constant 1 : index
    %12 = vector.load %arg2[%c0_8, %c1_9] : memref<4x5xf32, #tpu.memory_space<vmem>>, vector<4x1xf32>
    %13 = vector.shape_cast %12 : vector<4x1xf32> to vector<1x4x1xf32>
    %14 = vector.broadcast %11 : vector<1x1x32xf32> to vector<1x4x32xf32>
    %15 = vector.broadcast %13 : vector<1x4x1xf32> to vector<1x4x32xf32>
    %16 = arith.mulf %14, %15 : vector<1x4x32xf32>
    %17 = arith.addf %10, %16 : vector<1x4x32xf32>
    %c0_10 = arith.constant 0 : index
    %c2 = arith.constant 2 : index
    %c0_11 = arith.constant 0 : index
    %18 = vector.load %arg1[%c0_10, %c2, %c0_11] : memref<1x3x34xf32, #tpu.memory_space<vmem>>, vector<1x1x32xf32>
    %c0_12 = arith.constant 0 : index
    %c2_13 = arith.constant 2 : index
    %19 = vector.load %arg2[%c0_12, %c2_13] : memref<4x5xf32, #tpu.memory_space<vmem>>, vector<4x1xf32>
    %20 = vector.shape_cast %19 : vector<4x1xf32> to vector<1x4x1xf32>
    %21 = vector.broadcast %18 : vector<1x1x32xf32> to vector<1x4x32xf32>
    %22 = vector.broadcast %20 : vector<1x4x1xf32> to vector<1x4x32xf32>
    %23 = arith.mulf %21, %22 : vector<1x4x32xf32>
    %24 = arith.addf %17, %23 : vector<1x4x32xf32>
    %c0_14 = arith.constant 0 : index
    %c0_15 = arith.constant 0 : index
    %c1_16 = arith.constant 1 : index
    %25 = vector.load %arg1[%c0_14, %c0_15, %c1_16] : memref<1x3x34xf32, #tpu.memory_space<vmem>>, vector<1x1x32xf32>
    %c0_17 = arith.constant 0 : index
    %c3 = arith.constant 3 : index
    %26 = vector.load %arg2[%c0_17, %c3] : memref<4x5xf32, #tpu.memory_space<vmem>>, vector<4x1xf32>
    %27 = vector.shape_cast %26 : vector<4x1xf32> to vector<1x4x1xf32>
    %28 = vector.broadcast %25 : vector<1x1x32xf32> to vector<1x4x32xf32>
    %29 = vector.broadcast %27 : vector<1x4x1xf32> to vector<1x4x32xf32>
    %30 = arith.mulf %28, %29 : vector<1x4x32xf32>
    %31 = arith.addf %24, %30 : vector<1x4x32xf32>
    %c0_18 = arith.constant 0 : index
    %c1_19 = arith.constant 1 : index
    %c1_20 = arith.constant 1 : index
    %32 = vector.load %arg1[%c0_18, %c1_19, %c1_20] : memref<1x3x34xf32, #tpu.memory_space<vmem>>, vector<1x1x32xf32>
    %c0_21 = arith.constant 0 : index
    %c4 = arith.constant 4 : index
    %33 = vector.load %arg2[%c0_21, %c4] : memref<4x5xf32, #tpu.memory_space<vmem>>, vector<4x1xf32>
    %34 = vector.shape_cast %33 : vector<4x1xf32> to vector<1x4x1xf32>
    %35 = vector.broadcast %32 : vector<1x1x32xf32> to vector<1x4x32xf32>
    %36 = vector.broadcast %34 : vector<1x4x1xf32> to vector<1x4x32xf32>
    %37 = arith.mulf %35, %36 : vector<1x4x32xf32>
    %38 = arith.addf %31, %37 : vector<1x4x32xf32>
    %39 = math.absf %38 : vector<1x4x32xf32>
    %c0_22 = arith.constant 0 : index
    %c1_23 = arith.constant 1 : index
    %c0_24 = arith.constant 0 : index
    %40 = vector.load %arg1[%c0_22, %c1_23, %c0_24] : memref<1x3x34xf32, #tpu.memory_space<vmem>>, vector<1x1x32xf32>
    %c0_25 = arith.constant 0 : index
    %c0_26 = arith.constant 0 : index
    %41 = vector.load %arg2[%c0_25, %c0_26] : memref<4x5xf32, #tpu.memory_space<vmem>>, vector<4x1xf32>
    %42 = vector.shape_cast %41 : vector<4x1xf32> to vector<1x4x1xf32>
    %43 = vector.broadcast %40 : vector<1x1x32xf32> to vector<1x4x32xf32>
    %44 = vector.broadcast %42 : vector<1x4x1xf32> to vector<1x4x32xf32>
    %45 = arith.mulf %43, %44 : vector<1x4x32xf32>
    %46 = arith.addf %3, %45 : vector<1x4x32xf32>
    %c0_27 = arith.constant 0 : index
    %c2_28 = arith.constant 2 : index
    %c0_29 = arith.constant 0 : index
    %47 = vector.load %arg1[%c0_27, %c2_28, %c0_29] : memref<1x3x34xf32, #tpu.memory_space<vmem>>, vector<1x1x32xf32>
    %c0_30 = arith.constant 0 : index
    %c1_31 = arith.constant 1 : index
    %48 = vector.load %arg2[%c0_30, %c1_31] : memref<4x5xf32, #tpu.memory_space<vmem>>, vector<4x1xf32>
    %49 = vector.shape_cast %48 : vector<4x1xf32> to vector<1x4x1xf32>
    %50 = vector.broadcast %47 : vector<1x1x32xf32> to vector<1x4x32xf32>
    %51 = vector.broadcast %49 : vector<1x4x1xf32> to vector<1x4x32xf32>
    %52 = arith.mulf %50, %51 : vector<1x4x32xf32>
    %53 = arith.addf %46, %52 : vector<1x4x32xf32>
    %c0_32 = arith.constant 0 : index
    %c0_33 = arith.constant 0 : index
    %c1_34 = arith.constant 1 : index
    %54 = vector.load %arg1[%c0_32, %c0_33, %c1_34] : memref<1x3x34xf32, #tpu.memory_space<vmem>>, vector<1x1x32xf32>
    %c0_35 = arith.constant 0 : index
    %c2_36 = arith.constant 2 : index
    %55 = vector.load %arg2[%c0_35, %c2_36] : memref<4x5xf32, #tpu.memory_space<vmem>>, vector<4x1xf32>
    %56 = vector.shape_cast %55 : vector<4x1xf32> to vector<1x4x1xf32>
    %57 = vector.broadcast %54 : vector<1x1x32xf32> to vector<1x4x32xf32>
    %58 = vector.broadcast %56 : vector<1x4x1xf32> to vector<1x4x32xf32>
    %59 = arith.mulf %57, %58 : vector<1x4x32xf32>
    %60 = arith.addf %53, %59 : vector<1x4x32xf32>
    %c0_37 = arith.constant 0 : index
    %c1_38 = arith.constant 1 : index
    %c1_39 = arith.constant 1 : index
    %61 = vector.load %arg1[%c0_37, %c1_38, %c1_39] : memref<1x3x34xf32, #tpu.memory_space<vmem>>, vector<1x1x32xf32>
    %c0_40 = arith.constant 0 : index
    %c3_41 = arith.constant 3 : index
    %62 = vector.load %arg2[%c0_40, %c3_41] : memref<4x5xf32, #tpu.memory_space<vmem>>, vector<4x1xf32>
    %63 = vector.shape_cast %62 : vector<4x1xf32> to vector<1x4x1xf32>
    %64 = vector.broadcast %61 : vector<1x1x32xf32> to vector<1x4x32xf32>
    %65 = vector.broadcast %63 : vector<1x4x1xf32> to vector<1x4x32xf32>
    %66 = arith.mulf %64, %65 : vector<1x4x32xf32>
    %67 = arith.addf %60, %66 : vector<1x4x32xf32>
    %c0_42 = arith.constant 0 : index
    %c2_43 = arith.constant 2 : index
    %c1_44 = arith.constant 1 : index
    %68 = vector.load %arg1[%c0_42, %c2_43, %c1_44] : memref<1x3x34xf32, #tpu.memory_space<vmem>>, vector<1x1x32xf32>
    %c0_45 = arith.constant 0 : index
    %c4_46 = arith.constant 4 : index
    %69 = vector.load %arg2[%c0_45, %c4_46] : memref<4x5xf32, #tpu.memory_space<vmem>>, vector<4x1xf32>
    %70 = vector.shape_cast %69 : vector<4x1xf32> to vector<1x4x1xf32>
    %71 = vector.broadcast %68 : vector<1x1x32xf32> to vector<1x4x32xf32>
    %72 = vector.broadcast %70 : vector<1x4x1xf32> to vector<1x4x32xf32>
    %73 = arith.mulf %71, %72 : vector<1x4x32xf32>
    %74 = arith.addf %67, %73 : vector<1x4x32xf32>
    %75 = math.absf %74 : vector<1x4x32xf32>
    %76 = arith.maximumf %39, %75 : vector<1x4x32xf32>
    %c0_47 = arith.constant 0 : index
    %c2_48 = arith.constant 2 : index
    %c0_49 = arith.constant 0 : index
    %77 = vector.load %arg1[%c0_47, %c2_48, %c0_49] : memref<1x3x34xf32, #tpu.memory_space<vmem>>, vector<1x1x32xf32>
    %c0_50 = arith.constant 0 : index
    %c0_51 = arith.constant 0 : index
    %78 = vector.load %arg2[%c0_50, %c0_51] : memref<4x5xf32, #tpu.memory_space<vmem>>, vector<4x1xf32>
    %79 = vector.shape_cast %78 : vector<4x1xf32> to vector<1x4x1xf32>
    %80 = vector.broadcast %77 : vector<1x1x32xf32> to vector<1x4x32xf32>
    %81 = vector.broadcast %79 : vector<1x4x1xf32> to vector<1x4x32xf32>
    %82 = arith.mulf %80, %81 : vector<1x4x32xf32>
    %83 = arith.addf %3, %82 : vector<1x4x32xf32>
    %c0_52 = arith.constant 0 : index
    %c0_53 = arith.constant 0 : index
    %c1_54 = arith.constant 1 : index
    %84 = vector.load %arg1[%c0_52, %c0_53, %c1_54] : memref<1x3x34xf32, #tpu.memory_space<vmem>>, vector<1x1x32xf32>
    %c0_55 = arith.constant 0 : index
    %c1_56 = arith.constant 1 : index
    %85 = vector.load %arg2[%c0_55, %c1_56] : memref<4x5xf32, #tpu.memory_space<vmem>>, vector<4x1xf32>
    %86 = vector.shape_cast %85 : vector<4x1xf32> to vector<1x4x1xf32>
    %87 = vector.broadcast %84 : vector<1x1x32xf32> to vector<1x4x32xf32>
    %88 = vector.broadcast %86 : vector<1x4x1xf32> to vector<1x4x32xf32>
    %89 = arith.mulf %87, %88 : vector<1x4x32xf32>
    %90 = arith.addf %83, %89 : vector<1x4x32xf32>
    %c0_57 = arith.constant 0 : index
    %c1_58 = arith.constant 1 : index
    %c1_59 = arith.constant 1 : index
    %91 = vector.load %arg1[%c0_57, %c1_58, %c1_59] : memref<1x3x34xf32, #tpu.memory_space<vmem>>, vector<1x1x32xf32>
    %c0_60 = arith.constant 0 : index
    %c2_61 = arith.constant 2 : index
    %92 = vector.load %arg2[%c0_60, %c2_61] : memref<4x5xf32, #tpu.memory_space<vmem>>, vector<4x1xf32>
    %93 = vector.shape_cast %92 : vector<4x1xf32> to vector<1x4x1xf32>
    %94 = vector.broadcast %91 : vector<1x1x32xf32> to vector<1x4x32xf32>
    %95 = vector.broadcast %93 : vector<1x4x1xf32> to vector<1x4x32xf32>
    %96 = arith.mulf %94, %95 : vector<1x4x32xf32>
    %97 = arith.addf %90, %96 : vector<1x4x32xf32>
    %c0_62 = arith.constant 0 : index
    %c2_63 = arith.constant 2 : index
    %c1_64 = arith.constant 1 : index
    %98 = vector.load %arg1[%c0_62, %c2_63, %c1_64] : memref<1x3x34xf32, #tpu.memory_space<vmem>>, vector<1x1x32xf32>
    %c0_65 = arith.constant 0 : index
    %c3_66 = arith.constant 3 : index
    %99 = vector.load %arg2[%c0_65, %c3_66] : memref<4x5xf32, #tpu.memory_space<vmem>>, vector<4x1xf32>
    %100 = vector.shape_cast %99 : vector<4x1xf32> to vector<1x4x1xf32>
    %101 = vector.broadcast %98 : vector<1x1x32xf32> to vector<1x4x32xf32>
    %102 = vector.broadcast %100 : vector<1x4x1xf32> to vector<1x4x32xf32>
    %103 = arith.mulf %101, %102 : vector<1x4x32xf32>
    %104 = arith.addf %97, %103 : vector<1x4x32xf32>
    %c0_67 = arith.constant 0 : index
    %c0_68 = arith.constant 0 : index
    %c2_69 = arith.constant 2 : index
    %105 = vector.load %arg1[%c0_67, %c0_68, %c2_69] : memref<1x3x34xf32, #tpu.memory_space<vmem>>, vector<1x1x32xf32>
    %c0_70 = arith.constant 0 : index
    %c4_71 = arith.constant 4 : index
    %106 = vector.load %arg2[%c0_70, %c4_71] : memref<4x5xf32, #tpu.memory_space<vmem>>, vector<4x1xf32>
    %107 = vector.shape_cast %106 : vector<4x1xf32> to vector<1x4x1xf32>
    %108 = vector.broadcast %105 : vector<1x1x32xf32> to vector<1x4x32xf32>
    %109 = vector.broadcast %107 : vector<1x4x1xf32> to vector<1x4x32xf32>
    %110 = arith.mulf %108, %109 : vector<1x4x32xf32>
    %111 = arith.addf %104, %110 : vector<1x4x32xf32>
    %112 = math.absf %111 : vector<1x4x32xf32>
    %113 = arith.maximumf %76, %112 : vector<1x4x32xf32>
    %cst = arith.constant dense<0.000000e+00> : vector<1x4xf32>
    %114 = vector.multi_reduction <add>, %113, %cst [2] : vector<1x4x32xf32> to vector<1x4xf32>
    %115 = arith.mulf %113, %113 : vector<1x4x32xf32>
    %cst_72 = arith.constant dense<0.000000e+00> : vector<1x4xf32>
    %116 = vector.multi_reduction <add>, %115, %cst_72 [2] : vector<1x4x32xf32> to vector<1x4xf32>
    %cst_73 = arith.constant dense<0.000000e+00> : vector<4xf32>
    %117 = vector.multi_reduction <add>, %114, %cst_73 [0] : vector<1x4xf32> to vector<4xf32>
    %118 = vector.shape_cast %117 : vector<4xf32> to vector<1x4xf32>
    %cst_74 = arith.constant dense<0.000000e+00> : vector<4xf32>
    %119 = vector.multi_reduction <add>, %116, %cst_74 [0] : vector<1x4xf32> to vector<4xf32>
    %120 = vector.shape_cast %119 : vector<4xf32> to vector<1x4xf32>
    %121 = vector.shape_cast %118 : vector<1x4xf32> to vector<1x1x4xf32>
    %c0_75 = arith.constant 0 : index
    %c0_76 = arith.constant 0 : index
    %c0_77 = arith.constant 0 : index
    %122 = vector.load %arg4[%c0_75, %c0_76, %c0_77] : memref<1x2x4xf32, #tpu.memory_space<vmem>>, vector<1x1x4xf32>
    tpu.vector_store %arg4[%c0_75, %c0_76, %c0_77], %121 {strides = array<i32>} : memref<1x2x4xf32, #tpu.memory_space<vmem>>, vector<1x1x4xf32>,
    %123 = vector.shape_cast %120 : vector<1x4xf32> to vector<1x1x4xf32>
    %c0_78 = arith.constant 0 : index
    %c1_79 = arith.constant 1 : index
    %c0_80 = arith.constant 0 : index
    %124 = vector.load %arg4[%c0_78, %c1_79, %c0_80] : memref<1x2x4xf32, #tpu.memory_space<vmem>>, vector<1x1x4xf32>
    tpu.vector_store %arg4[%c0_78, %c1_79, %c0_80], %123 {strides = array<i32>} : memref<1x2x4xf32, #tpu.memory_space<vmem>>, vector<1x1x4xf32>,
    return
  }
  func.func @transform_0(%arg0: i32) -> (i32, i32, i32) {
    %c0_i32 = arith.constant 0 : i32
    %c0_i32_0 = arith.constant 0 : i32
    %c0_i32_1 = arith.constant 0 : i32
    return %arg0, %c0_i32, %c0_i32_0 : i32, i32, i32
  }
  func.func @transform_1(%arg0: i32) -> (i32, i32) {
    %c0_i32 = arith.constant 0 : i32
    %c0_i32_0 = arith.constant 0 : i32
    %c0_i32_1 = arith.constant 0 : i32
    return %c0_i32, %c0_i32_0 : i32, i32
  }
  func.func @transform_2(%arg0: i32) -> (i32, i32) {
    %c0_i32 = arith.constant 0 : i32
    %c0_i32_0 = arith.constant 0 : i32
    %c0_i32_1 = arith.constant 0 : i32
    return %c0_i32, %c0_i32_0 : i32, i32
  }
  func.func @transform_3(%arg0: i32) -> (i32, i32, i32) {
    %c0_i32 = arith.constant 0 : i32
    %c0_i32_0 = arith.constant 0 : i32
    %c0_i32_1 = arith.constant 0 : i32
    return %arg0, %c0_i32, %c0_i32_0 : i32, i32, i32
  }
}

</mosaic_0001>

<llo_original>
// kernel: tpu_custom_call.1
$region0: #{tpu_custom_call.1}
  #allocation0 [shape = 'u32[]', space=smem, size = 0x4, offset = 0x4, fixed_abs, tag = 'smem constant byte address 0x4 - core index']
  #allocation1 [shape = 'u32[72,128]{1,0:T(1,128)}', space=vmem, size = 0x9000, scoped, tag = 'internal scratch']
  %s0 = inlined_call_operand.vmem [shape: f32[2,3,34], index: 0, kind: input, shape index: {}]
  %s1 = inlined_call_operand.vmem [shape: f32[4,5], index: 1, kind: input, shape index: {}]
  %s2 = inlined_call_operand.vmem [shape: f32[4,1], index: 2, kind: input, shape index: {}]
  %s3 = inlined_call_operand.hbm [shape: f32[2,2,4], index: 3, kind: output, shape index: {}]
  %s4 = sld [smem:[#allocation0]]
  $region45: #{tpu_custom_call.1} parent=0
    _
  %s6 = ssub.s32 1, %s4
  %s7 = scalar_select 0, %s6, %s4
  $region1: #{tpu_custom_call.1} parent=0
    #allocation2 [shape = 'u8[2048]{0}', space=vmem, size = 0x800, scoped, tag = 'output window, operand 0']
    #allocation3 [shape = 's32[2]{0}', space=sflag, size = 0x8, scoped, tag = 'scoped memory for tpu_custom_call.1']
    %8 = vsyncpa [#allocation3], 0
    %s9 = scalar_lea.sflag [#allocation3], 1
    %10 = vsyncpa %s9, 0
    loop: start=0, step=1, limit=4
    $region2: #{tpu_custom_call.1} parent=1 // loop_pre_header
      _
    $region3: #{tpu_custom_call.1} parent=1 // loop_header
      %s12 = sphi 0, %s16
      %p13 = scmp.ge.s32.totalorder %s12, 4
      %s22 = sphi 0, %s24
      %s25 = sphi 0, %s22
      %s26 = sphi 0, %s25
      %s42 = sphi 0, %s26
      %s46 = sphi 0, %s46
      %s48 = sphi 0, %s46
      %s49 = sphi 0, %s48
      %s63 = sphi 0, %s49
      %s67 = sphi 0, %s67
      %s69 = sphi 0, %s67
      %s70 = sphi 0, %s69
      %s84 = sphi 0, %s70
      %s90 = sphi 0, %s92
      %s93 = sphi 0, %s90
      %s94 = sphi 0, %s93
      %s110 = sphi 0, %s94
    $region4: #{tpu_custom_call.1} parent=1 // loop_header_branch
      %15 = sbr.rel (%p13) target = $region8
    $region5: #{tpu_custom_call.1} parent=1 // loop_body
      %s17 = ssub.s32 %s12, 1
      %s18 = ssub.s32 %s12, 2
      %s19 = sadd.s32 %s12, 1
      %s20 = ssub.s32 %s12, %s19
      %p21 = scmp.eq.s32.totalorder %s20, 0
      %s23 = sadd.s32 %s22, 1
      %s24 = scalar_select %p21, %s22, %s23
      %p27 = pneg %p21
      %p28 = scmp.eq.s32.totalorder %s12, 1
      %p29 = por %p27, %p28
      %p30 = scmp.ne.s32.totalorder %s22, %s25
      %p31 = scmp.eq.s32.totalorder %s12, 0
      %p32 = por %p30, %p31
      %p33 = scmp.ne.s32.totalorder %s22, %s25
      %p34 = scmp.eq.s32.totalorder %s17, 1
      %p35 = por %p33, %p34
      %p36 = scmp.ne.s32.totalorder %s25, %s26
      %p37 = scmp.eq.s32.totalorder %s17, 0
      %p38 = por %p36, %p37
      %p39 = scmp.ne.s32.totalorder %s25, %s26
      %p40 = scmp.eq.s32.totalorder %s18, 1
      %p41 = por %p39, %p40
      %p43 = scmp.ne.s32.totalorder %s26, %s42
      %p44 = scmp.eq.s32.totalorder %s18, 0
      %p45 = por %p43, %p44
      %s47 = sadd.s32 %s46, 1
      %p50 = scmp.eq.s32.totalorder %s12, 1
      %p51 = scmp.ne.s32.totalorder %s46, %s48
      %p52 = scmp.eq.s32.totalorder %s12, 0
      %p53 = por %p51, %p52
      %p54 = scmp.ne.s32.totalorder %s46, %s48
      %p55 = scmp.eq.s32.totalorder %s17, 1
      %p56 = por %p54, %p55
      %p57 = scmp.ne.s32.totalorder %s48, %s49
      %p58 = scmp.eq.s32.totalorder %s17, 0
      %p59 = por %p57, %p58
      %p60 = scmp.ne.s32.totalorder %s48, %s49
      %p61 = scmp.eq.s32.totalorder %s18, 1
      %p62 = por %p60, %p61
      %p64 = scmp.ne.s32.totalorder %s49, %s63
      %p65 = scmp.eq.s32.totalorder %s18, 0
      %p66 = por %p64, %p65
      %s68 = sadd.s32 %s67, 1
      %p71 = scmp.eq.s32.totalorder %s12, 1
      %p72 = scmp.ne.s32.totalorder %s67, %s69
      %p73 = scmp.eq.s32.totalorder %s12, 0
      %p74 = por %p72, %p73
      %p75 = scmp.ne.s32.totalorder %s67, %s69
      %p76 = scmp.eq.s32.totalorder %s17, 1
      %p77 = por %p75, %p76
      %p78 = scmp.ne.s32.totalorder %s69, %s70
      %p79 = scmp.eq.s32.totalorder %s17, 0
      %p80 = por %p78, %p79
      %p81 = scmp.ne.s32.totalorder %s69, %s70
      %p82 = scmp.eq.s32.totalorder %s18, 1
      %p83 = por %p81, %p82
      %p85 = scmp.ne.s32.totalorder %s70, %s84
      %p86 = scmp.eq.s32.totalorder %s18, 0
      %p87 = por %p85, %p86
      %s88 = ssub.s32 %s12, %s19
      %p89 = scmp.eq.s32.totalorder %s88, 0
      %s91 = sadd.s32 %s90, 1
      %s92 = scalar_select %p89, %s90, %s91
      %p95 = pneg %p89
      %p96 = scmp.eq.s32.totalorder %s12, 1
      %p97 = por %p95, %p96
      %p98 = scmp.ne.s32.totalorder %s90, %s93
      %p99 = scmp.eq.s32.totalorder %s12, 0
      %p100 = por %p98, %p99
      %p101 = scmp.ne.s32.totalorder %s90, %s93
      %p102 = scmp.eq.s32.totalorder %s17, 1
      %p103 = por %p101, %p102
      %p104 = scmp.ne.s32.totalorder %s93, %s94
      %p105 = scmp.eq.s32.totalorder %s17, 0
      %p106 = por %p104, %p105
      %p107 = scmp.ne.s32.totalorder %s93, %s94
      %p108 = scmp.eq.s32.totalorder %s18, 1
      %p109 = por %p107, %p108
      %p111 = scmp.ne.s32.totalorder %s94, %s110
      %p112 = scmp.eq.s32.totalorder %s18, 0
      %p113 = por %p111, %p112
      %p114 = scmp.le.s32.totalorder 1, %s12
      %p115 = scmp.lt.s32.totalorder %s12, 3
      %p116 = pnand %p114, %p115
      %p117 = pneg %p116
      // Predicated region
      $region9: #{tpu_custom_call.1} parent=5 // pred_check
        _
      $region10: #{tpu_custom_call.1} parent=5 // pred_check_branch
        %119 = sbr.rel (%p116) target = $region12
      $region11: #{tpu_custom_call.1} parent=5 // pred_region
        %s120 = ssub.s32 %s12, 1
        // Predicated region
        $region13: #{tpu_custom_call.1} parent=11 // pred_check
          %p121 = pneg %p59
        $region14: #{tpu_custom_call.1} parent=11 // pred_check_branch
          %123 = sbr.rel (%p121) target = $region16
        $region15: #{tpu_custom_call.1} parent=11 // pred_region
          _
        $region16: #{tpu_custom_call.1} parent=11 // pred_fallthru
          _
        // Predicated region
        $region17: #{tpu_custom_call.1} parent=11 // pred_check
          %p124 = pneg %p80
        $region18: #{tpu_custom_call.1} parent=11 // pred_check_branch
          %126 = sbr.rel (%p124) target = $region20
        $region19: #{tpu_custom_call.1} parent=11 // pred_region
          _
        $region20: #{tpu_custom_call.1} parent=11 // pred_fallthru
          _
      $region12: #{tpu_custom_call.1} parent=5 // pred_fallthru
        _
      %p127 = scmp.lt.s32.totalorder %s12, 2
      // Predicated region
      $region21: #{tpu_custom_call.1} parent=5 // pred_check
        %p128 = pneg %p127
      $region22: #{tpu_custom_call.1} parent=5 // pred_check_branch
        %130 = sbr.rel (%p128) target = $region24
      $region23: #{tpu_custom_call.1} parent=5 // pred_region
        // Predicated region
        $region25: #{tpu_custom_call.1} parent=23 // pred_check
          %p131 = pneg %p32
        $region26: #{tpu_custom_call.1} parent=23 // pred_check_branch
          %133 = sbr.rel (%p131) target = $region28
        $region27: #{tpu_custom_call.1} parent=23 // pred_region
          %p134 = scmp.lt.s32.totalorder %s12, 1
          %s135 = scalar_select %p134, %s12, 1
          %s136 = smul.addr %s135, 4
          %s137 = scalar_lea.vmem %s0, %s136
        $region28: #{tpu_custom_call.1} parent=23 // pred_fallthru
          _
      $region24: #{tpu_custom_call.1} parent=5 // pred_fallthru
        _
      %p138 = scmp.le.s32.totalorder 1, %s12
      %p139 = scmp.lt.s32.totalorder %s12, 3
      %p140 = pnand %p138, %p139
      %p141 = pneg %p140
      // Predicated region
      $region29: #{tpu_custom_call.1} parent=5 // pred_check
        _
      $region30: #{tpu_custom_call.1} parent=5 // pred_check_branch
        %143 = sbr.rel (%p140) target = $region32
      $region31: #{tpu_custom_call.1} parent=5 // pred_region
        %s144 = ssub.s32 %s12, 1
        %p145 = scmp.lt.s32.totalorder %s17, 1
        %s146 = scalar_select %p145, %s17, 1
        %s147 = smul.addr %s146, 4
        %s148 = scalar_lea.vmem %s0, %s147
        %p149 = pneg %p38
        %p150 = pneg %p35
        %p151 = pneg %p59
        %p152 = pneg %p56
        %p153 = pneg %p80
        %p154 = pneg %p77
        %p155 = pneg %p106
        %p156 = pneg %p103
        %s157 = sand.u32 %s93, 1
        %s158 = scalar_lea.sflag [#allocation3], %s157
        %s159 = sand.u32 %s93, 1
        %s160 = smul.addr %s159, 2
        %s161 = scalar_lea.vmem [#allocation2], %s160
        %p162 = scmp.lt.s32.totalorder %s17, 1
        %s163 = scalar_select %p162, %s17, 1
        %s164 = smul.addr %s163, 4
        %s165 = scalar_lea.vmem %s0, %s164
        %v166 = vld [vmem:[%s2] sm:$0xf]
        %168 = vset.pattern.permute.xlu0 0
        %169 = vperm.xlu0 %168, %v166
        %v170 = vpop.permute.xlu0 %169
        %v172 = vld [vmem:[%s165] sm:$0x1]
        %v173 = vld [vmem:[%s1] sm:$0xf]
        %v174 = vperm.slane %v172, 0
        %176 = vset.pattern.permute.xlu0 0
        %177 = vperm.xlu0 %176, %v173
        %v178 = vpop.permute.xlu0 %177
        %v180 = vmul.f32 %v174, %v178
        %v181 = vadd.f32 %v170, %v180
        %v182 = vld [vmem:[%s165 + $0x1] sm:$0x1]
        %v183 = vperm.slane %v182, 0
        %184 = vset.pattern.permute.xlu0 1
        %185 = vperm.xlu0 %184, %v173
        %v186 = vpop.permute.xlu0 %185
        %v188 = vmul.f32 %v183, %v186
        %v189 = vadd.f32 %v181, %v188
        %v190 = vld [vmem:[%s165 + $0x2] sm:$0x1]
        %v191 = vperm.slane %v190, 0
        %192 = vset.pattern.permute.xlu0 2
        %193 = vperm.xlu0 %192, %v173
        %v194 = vpop.permute.xlu0 %193
        %v196 = vmul.f32 %v191, %v194
        %v197 = vadd.f32 %v189, %v196
        %198 = vset.pattern.permute.xlu0 3
        %199 = vperm.xlu0 %198, %v173
        %v200 = vpop.permute.xlu0 %199
        %v202 = vmul.f32 %v174, %v200
        %204 = vrot.lane.b32.xlu0 %v202, 127
        %v205 = vpop.permute.xlu0 %204
        %v207 = vadd.f32 %v197, %v205
        %208 = vset.pattern.permute.xlu0 4
        %209 = vperm.xlu0 %208, %v173
        %v210 = vpop.permute.xlu0 %209
        %v212 = vmul.f32 %v183, %v210
        %214 = vrot.lane.b32.xlu0 %v212, 127
        %v215 = vpop.permute.xlu0 %214
        %v217 = vadd.f32 %v207, %v215
        %v218 = vand.u32 2147483647, %v217
        %v219 = vmul.f32 %v183, %v178
        %v220 = vadd.f32 %v170, %v219
        %v221 = vmul.f32 %v191, %v186
        %v222 = vadd.f32 %v220, %v221
        %v223 = vmul.f32 %v174, %v194
        %225 = vrot.lane.b32.xlu0 %v223, 127
        %v226 = vpop.permute.xlu0 %225
        %v228 = vadd.f32 %v222, %v226
        %v229 = vmul.f32 %v183, %v200
        %231 = vrot.lane.b32.xlu0 %v229, 127
        %v232 = vpop.permute.xlu0 %231
        %v234 = vadd.f32 %v228, %v232
        %v235 = vmul.f32 %v191, %v210
        %237 = vrot.lane.b32.xlu0 %v235, 127
        %v238 = vpop.permute.xlu0 %237
        %v240 = vadd.f32 %v234, %v238
        %v241 = vand.u32 2147483647, %v240
        %v242 = vmax.f32 %v218, %v241
        %v243 = vmul.f32 %v191, %v178
        %v244 = vadd.f32 %v170, %v243
        %v245 = vmul.f32 %v174, %v186
        %247 = vrot.lane.b32.xlu0 %v245, 127
        %v248 = vpop.permute.xlu0 %247
        %v250 = vadd.f32 %v244, %v248
        %v251 = vmul.f32 %v183, %v194
        %253 = vrot.lane.b32.xlu0 %v251, 127
        %v254 = vpop.permute.xlu0 %253
        %v256 = vadd.f32 %v250, %v254
        %v257 = vmul.f32 %v191, %v200
        %259 = vrot.lane.b32.xlu0 %v257, 127
        %v260 = vpop.permute.xlu0 %259
        %v262 = vadd.f32 %v256, %v260
        %v263 = vmul.f32 %v174, %v210
        %265 = vrot.lane.b32.xlu0 %v263, 126
        %v266 = vpop.permute.xlu0 %265
        %v268 = vadd.f32 %v262, %v266
        %v269 = vand.u32 2147483647, %v268
        %v270 = vmax.f32 %v242, %v269
        %vm271 = vcmask 257024
        %v272 = vsel %vm271, %v270, 0.0
        %273 = vadd.xlane.f32.xlu0 %v272
        %v274 = vpop.xlane.xlu0 %273
        %v275 = vmul.f32 %v270, %v270
        %v276 = vsel %vm271, %v275, 0.0
        %277 = vadd.xlane.f32.xlu0 %v276
        %v278 = vpop.xlane.xlu0 %277
        %v279 = vadd.f32 %v274, 0.0
        %v280 = vadd.f32 %v278, 0.0
        %v282 = vlaneseq
        %v283 = vand.u32 %v282, 127
        %v284 = vperm.slane %v279, %v283
        %vm286 = vcmask 24576
        %287 = vst.msk [vmem:[%s161] sm:$0x1] %vm286, %v284
        %v289 = vperm.slane %v280, %v283
        %291 = vst.msk [vmem:[%s161 + $0x1] sm:$0x1] %vm286, %v289
        %s292 = sand.u32 %s93, 1
        %s293 = scalar_lea.sflag [#allocation3], %s292
        %s294 = sand.u32 %s93, 1
        %s295 = smul.addr %s294, 2
        %s296 = scalar_lea.vmem [#allocation2], %s295
        // Predicated region
        $region33: #{tpu_custom_call.1} parent=31 // pred_check
          %p297 = pneg %p103
        $region34: #{tpu_custom_call.1} parent=31 // pred_check_branch
          %299 = sbr.rel (%p297) target = $region36
        $region35: #{tpu_custom_call.1} parent=31 // pred_region
          %301 = vsyncadd %s293, 0
          %s302 = smul.addr %s17, 2
          %s303 = scalar_lea.hbm %s3, %s302
          %s305 = sshll.u32 %s296, 4
          %s306 = int_to_ptr.vmem [resolvable:$true] %s305
          %s307 = sshll.u32 %s303, 4
          %s308 = int_to_ptr.hbm [resolvable:$true] %s307
          %310 = dma.vmem_to_hbm [thread:$0]  %s306, 32, %s308, %s293
        $region36: #{tpu_custom_call.1} parent=31 // pred_fallthru
          _
      $region32: #{tpu_custom_call.1} parent=5 // pred_fallthru
        _
      %p311 = scmp.le.s32.totalorder 2, %s12
      // Predicated region
      $region37: #{tpu_custom_call.1} parent=5 // pred_check
        %p312 = pneg %p311
      $region38: #{tpu_custom_call.1} parent=5 // pred_check_branch
        %314 = sbr.rel (%p312) target = $region40
      $region39: #{tpu_custom_call.1} parent=5 // pred_region
        %s315 = ssub.s32 %s12, 2
        // Predicated region
        $region41: #{tpu_custom_call.1} parent=39 // pred_check
          %p316 = pneg %p109
        $region42: #{tpu_custom_call.1} parent=39 // pred_check_branch
          %318 = sbr.rel (%p316) target = $region44
        $region43: #{tpu_custom_call.1} parent=39 // pred_region
          %s319 = sand.u32 %s94, 1
          %s320 = scalar_lea.sflag [#allocation3], %s319
          %s321 = sand.u32 %s94, 1
          %s322 = smul.addr %s321, 2
          %s323 = scalar_lea.vmem [#allocation2], %s322
          %325 = dma.done %s320, 32
        $region44: #{tpu_custom_call.1} parent=39 // pred_fallthru
          _
      $region40: #{tpu_custom_call.1} parent=5 // pred_fallthru
        _
    $region6: #{tpu_custom_call.1} parent=1 // loop_footer
      %s16 = sadd.s32 1, %s12
    $region7: #{tpu_custom_call.1} parent=1 // loop_footer_branch
      %11 = sbr.rel target = $region3
    $region8: #{tpu_custom_call.1} parent=1 // loop_exit
      _
    %326 = vsyncpa [#allocation3], 1
    %s327 = scalar_lea.sflag [#allocation3], 1
    %328 = vsyncpa %s327, 1

</llo_original>
